<compile_context>
chip_gen: v7x
topology: tpu7x:2x2x1
jax: 0.10.0
libtpu: 0.0.40
codegen_flags: <defaults>
</compile_context>

<pallas_src>
import numpy as np
import jax
import jax.numpy as jnp
from jax.experimental import pallas as pl
from jax.experimental.pallas import tpu as pltpu


# ------------------------------------------------------------------ kernel ---
def _region_matmul_kernel(in_ref, st_ref, spec_ref, out_ref, acc_ref):
    # in_ref  : (M_pad, TILE)   activations block (K-slice), matmul dtype
    # st_ref  : (TILE, TILE)    S^T block (K x Nout), matmul dtype
    # spec_ref: (M_pad, 1)      relu(grating_spectrum[c]) replicated over batch, f32
    # out_ref : (M_pad, TILE)   output block (Nout-slice), x.dtype
    # acc_ref : (M_pad, TILE)   f32 VMEM accumulator, resident across the K axis
    k = pl.program_id(2)

    @pl.when(k == 0)
    def _():
        acc_ref[...] = jnp.zeros_like(acc_ref)

    acc_ref[...] += jnp.dot(in_ref[...], st_ref[...],
                            preferred_element_type=jnp.float32)

    @pl.when(k == pl.num_programs(2) - 1)
    def _():
        out_ref[...] = (acc_ref[...] * spec_ref[...]).astype(out_ref.dtype)


# ------------------------------------------------------- parameter -> matrix ---
def _build_sampling_matrix_T(theta, Hr, Wr):
    """Replicates F.affine_grid(align_corners=False) followed by
    F.grid_sample(mode='bilinear', padding_mode='zeros', align_corners=False)
    as a dense TRANSPOSED matrix S^T of shape (P, P) such that
        out_flat = in_flat @ S^T        (per (n, c) row)."""
    xs = (2.0 * jnp.arange(Wr, dtype=jnp.float32) + 1.0) / Wr - 1.0   # width coords
    ys = (2.0 * jnp.arange(Hr, dtype=jnp.float32) + 1.0) / Hr - 1.0   # height coords
    X = jnp.broadcast_to(xs[None, :], (Hr, Wr))
    Y = jnp.broadcast_to(ys[:, None], (Hr, Wr))
    gx = theta[0, 0] * X + theta[0, 1] * Y + theta[0, 2]
    gy = theta[1, 0] * X + theta[1, 1] * Y + theta[1, 2]
    # un-normalize (align_corners=False)
    ix = ((gx + 1.0) * Wr - 1.0) * 0.5
    iy = ((gy + 1.0) * Hr - 1.0) * 0.5
    ix0 = jnp.floor(ix)
    iy0 = jnp.floor(iy)
    ix1 = ix0 + 1.0
    iy1 = iy0 + 1.0
    wx1 = ix - ix0
    wx0 = 1.0 - wx1
    wy1 = iy - iy0
    wy0 = 1.0 - wy1

    P = Hr * Wr
    rows = jnp.arange(P)                       # output-pixel index
    ST = jnp.zeros((P, P), dtype=jnp.float32)  # transposed directly: ST[src, dst]

    def add_corner(ST, cx, cy, w):
        inb = (cx >= 0) & (cx <= Wr - 1) & (cy >= 0) & (cy <= Hr - 1)
        cxc = jnp.clip(cx, 0, Wr - 1).astype(jnp.int32)
        cyc = jnp.clip(cy, 0, Hr - 1).astype(jnp.int32)
        q = (cyc * Wr + cxc).reshape(-1)       # source-pixel index
        wv = (w * inb.astype(jnp.float32)).reshape(-1)
        return ST.at[q, rows].add(wv)

    ST = add_corner(ST, ix0, iy0, wx0 * wy0)
    ST = add_corner(ST, ix1, iy0, wx1 * wy0)
    ST = add_corner(ST, ix0, iy1, wx0 * wy1)
    ST = add_corner(ST, ix1, iy1, wx1 * wy1)
    return ST


def _round_up(v, m):
    return ((v + m - 1) // m) * m


# ---------------------------------------------------------------- wrappers ---
def affine_transform_forward(x, params, pos, *, matmul_dtype=jnp.bfloat16):
    """x: (N, C, H, W).  pos: static numpy int array (R, 2, 2).
    params: dict with 'transX','transY' (R,), 'scaleX','scaleY' (R, 2),
            'grating_spectrum' (R, C).
    Matches the PyTorch module's forward (scale=True, grating=True branch):
    every region reads the ORIGINAL x and writes into a clone."""
    N, C, H, W = x.shape
    R = pos.shape[0]
    M = N * C
    M_pad = _round_up(M, 16)     # sublane-dense for f32 (8) and packed bf16 (16)

    # ---- region geometry (static) ------------------------------------------
    geoms = []
    for i in range(R):
        r0, r1 = int(pos[i, 0, 0]), int(pos[i, 0, 1])
        c0, c1 = int(pos[i, 1, 0]), int(pos[i, 1, 1])
        Hr, Wr = r1 - r0, c1 - c0
        geoms.append((r0, r1, c0, c1, Hr, Wr, Hr * Wr))
    P_max = max(g[6] for g in geoms)
    P_pad = _round_up(max(P_max, 128), 128)          # lane-dense last dim
    TILE = 256 if (P_pad % 256 == 0) else 128        # 256 matches v6e/v7x MXU; 128 on small P
    n_blk = P_pad // TILE

    # ---- build stacked operands in JAX glue (param/data dependent) ----------
    in_blocks, st_blocks, spec_blocks = [], [], []
    for i, (r0, r1, c0, c1, Hr, Wr, P) in enumerate(geoms):
        # fill_theta (scale=True branch):
        #   theta[0,:2] = scaleX, theta[1,:2] = scaleY, theta[0,2]=transY, theta[1,2]=transX
        theta = jnp.stack([
            jnp.stack([params["scaleX"][i, 0], params["scaleX"][i, 1], params["transY"][i]]),
            jnp.stack([params["scaleY"][i, 0], params["scaleY"][i, 1], params["transX"][i]]),
        ])
        ST = _build_sampling_matrix_T(theta, Hr, Wr)                     # (P, P)
        ST = jnp.pad(ST, ((0, P_pad - P), (0, P_pad - P)))               # (P_pad, P_pad)
        st_blocks.append(ST.astype(matmul_dtype))

        region = x[:, :, r0:r1, c0:c1]                                   # static slice of ORIGINAL x
        flat = region.reshape(M, P).astype(matmul_dtype)
        flat = jnp.pad(flat, ((0, M_pad - M), (0, P_pad - P)))
        in_blocks.append(flat)

        spec = jax.nn.relu(params["grating_spectrum"][i]).astype(jnp.float32)
        spec = jnp.tile(spec, (N,)).reshape(M, 1)
        spec_blocks.append(jnp.pad(spec, ((0, M_pad - M), (0, 0))))

    IN = jnp.stack(in_blocks)        # (R, M_pad, P_pad)  matmul_dtype
    STM = jnp.stack(st_blocks)       # (R, P_pad, P_pad)  matmul_dtype
    SPEC = jnp.stack(spec_blocks)    # (R, M_pad, 1)      f32

    itemsz = jnp.dtype(matmul_dtype).itemsize
    cost = pl.CostEstimate(
        flops=2 * R * M_pad * P_pad * P_pad,
        transcendentals=0,
        bytes_accessed=(R * M_pad * P_pad * itemsz            # activations
                        + R * P_pad * P_pad * itemsz          # S^T (dominant term)
                        + R * M_pad * 4                       # spec
                        + R * M_pad * P_pad * x.dtype.itemsize),  # output
    )

    # ---- one fused, K/N-tiled pallas_call over all regions ------------------
    OUT = pl.pallas_call(
        _region_matmul_kernel,
        grid=(R, n_blk, n_blk),      # (region, output tile, contraction tile)
        out_shape=jax.ShapeDtypeStruct((R, M_pad, P_pad), x.dtype),
        in_specs=[
            pl.BlockSpec((None, M_pad, TILE), lambda r, n, k: (r, 0, k)),   # activations (K slice)
            pl.BlockSpec((None, TILE, TILE), lambda r, n, k: (r, k, n)),    # S^T (K x Nout tile)
            pl.BlockSpec((None, M_pad, 1), lambda r, n, k: (r, 0, 0)),      # spectrum
        ],
        out_specs=pl.BlockSpec((None, M_pad, TILE), lambda r, n, k: (r, 0, n)),
        scratch_shapes=[pltpu.VMEM((M_pad, TILE), jnp.float32)],            # f32 accumulator
        compiler_params=pltpu.CompilerParams(
            dimension_semantics=("parallel", "parallel", "arbitrary")),
        cost_estimate=cost,
    )(IN, STM, SPEC)

    # ---- scatter region outputs back (static slices; XLA fuses in-place) ----
    out = x
    for i, (r0, r1, c0, c1, Hr, Wr, P) in enumerate(geoms):
        region_out = OUT[i, :M, :P].reshape(N, C, Hr, Wr).astype(x.dtype)
        out = out.at[:, :, r0:r1, c0:c1].set(region_out)
    return out


# ------------------------------------------------------------------- main ---
if __name__ == "__main__":
    # Small shapes consistent with the module's forward: NCHW input, 2 regions.
    N, C, H, W = 2, 8, 16, 16
    pos = np.array([[[0, 8], [0, 8]],      # region 0: rows 0:8,  cols 0:8
                    [[8, 16], [4, 12]]],   # region 1: rows 8:16, cols 4:12
                   dtype=np.int32)
    R = pos.shape[0]

    key = jax.random.PRNGKey(0)
    x = jax.random.normal(key, (N, C, H, W), dtype=jnp.float32)

    # Deterministic parameter init (nontrivial: small rotation + asymmetric translation,
    # spectrum with negative entries to exercise the ReLU).
    angles = jnp.array([0.15, -0.10], dtype=jnp.float32)          # radians, per region
    params = {
        "transX": jnp.array([0.05, -0.08], dtype=jnp.float32),
        "transY": jnp.array([-0.03, 0.06], dtype=jnp.float32),
        "scaleX": jnp.stack([jnp.cos(angles), -jnp.sin(angles)], axis=-1),  # (R, 2)
        "scaleY": jnp.stack([jnp.sin(angles), jnp.cos(angles)], axis=-1),   # (R, 2)
        "grating_spectrum": jnp.linspace(-0.5, 2.0, R * C,
                                         dtype=jnp.float32).reshape(R, C),
    }

    # Plain-JAX f32 reference mirroring the PyTorch forward.
    def ref_forward(xx, pp):
        out = xx
        for i in range(R):
            r0, r1 = int(pos[i, 0, 0]), int(pos[i, 0, 1])
            c0, c1 = int(pos[i, 1, 0]), int(pos[i, 1, 1])
            Hr, Wr = r1 - r0, c1 - c0
            theta = jnp.stack([
                jnp.stack([pp["scaleX"][i, 0], pp["scaleX"][i, 1], pp["transY"][i]]),
                jnp.stack([pp["scaleY"][i, 0], pp["scaleY"][i, 1], pp["transX"][i]]),
            ])
            ST = _build_sampling_matrix_T(theta, Hr, Wr)
            spec = jax.nn.relu(pp["grating_spectrum"][i])
            reg = xx[:, :, r0:r1, c0:c1].reshape(N * C, Hr * Wr)
            sampled = (reg @ ST) * jnp.tile(spec, (N,))[:, None]
            out = out.at[:, :, r0:r1, c0:c1].set(sampled.reshape(N, C, Hr, Wr))
        return out

    y_ref = ref_forward(x, params)

    # Exact-precision path (f32 MXU operands) -> tight correctness check.
    fwd_f32 = jax.jit(lambda xx, pp: affine_transform_forward(
        xx, pp, pos, matmul_dtype=jnp.float32))
    y_f32 = fwd_f32(x, params)
    jax.block_until_ready(y_f32)
    assert jnp.allclose(y_f32, y_ref, atol=1e-5, rtol=1e-5), "Pallas f32 path mismatch"

    # Default fast path (bf16 operands, f32 accumulation) -> looser tolerance, same semantics.
    fwd = jax.jit(lambda xx, pp: affine_transform_forward(xx, pp, pos))
    y = fwd(x, params)
    jax.block_until_ready(y)
    assert y.shape == x.shape and y.dtype == x.dtype
    assert jnp.allclose(y, y_ref, atol=5e-2, rtol=5e-2), "Pallas bf16 path mismatch"

    print("KERNEL_OK")
</pallas_src>

<mosaic_0001>
module attributes {stable_mosaic.version = 11 : i64} {
  func.func private @main(%arg0: i32) attributes {dimension_semantics = [#tpu.dimension_semantics<core_parallel>], iteration_bounds = array<i64: 2>, tpu.core_type = #tpu.core_type<sc_scalar_subcore>, window_params = []} {
    return
  }
}

module attributes {stable_mosaic.version = 11 : i64} {
  func.func private @main(%arg0: i32) attributes {dimension_semantics = [#tpu.dimension_semantics<core_parallel>], iteration_bounds = array<i64: 2>, tpu.core_type = #tpu.core_type<sc_scalar_subcore>, window_params = []} {
    return
  }
}

module attributes {stable_mosaic.version = 11 : i64} {
  func.func @_region_matmul_kernel(%arg0: i32, %arg1: i32, %arg2: i32, %arg3: memref<1x16x128xf32, #tpu.memory_space<vmem>>, %arg4: memref<1x128x128xf32, #tpu.memory_space<vmem>>, %arg5: memref<1x16x1xf32, #tpu.memory_space<vmem>>, %arg6: memref<1x16x128xf32, #tpu.memory_space<vmem>>, %arg7: memref<16x128xf32, #tpu.memory_space<vmem>>) attributes {dimension_semantics = [#tpu.dimension_semantics<parallel>, #tpu.dimension_semantics<parallel>, #tpu.dimension_semantics<arbitrary>], iteration_bounds = array<i64: 2, 1, 1>, scalar_prefetch = 0 : i64, scratch_operands = 1 : i64, tpu.core_type = #tpu.core_type<tc>, window_params = [{transform_indices = @transform_0, window_bounds = array<i64: 1, 16, 128>}, {transform_indices = @transform_1, window_bounds = array<i64: 1, 128, 128>}, {transform_indices = @transform_2, window_bounds = array<i64: 1, 16, 1>}, {transform_indices = @transform_3, window_bounds = array<i64: 1, 16, 128>}]} {
    %c0_i32 = arith.constant 0 : i32
    %0 = arith.cmpi eq, %arg2, %c0_i32 : i32
    %1 = arith.extui %0 : i1 to i32
    %c0_i32_0 = arith.constant 0 : i32
    %2 = arith.cmpi ne, %1, %c0_i32_0 : i32
    scf.if %2 {
      %cst_12 = arith.constant 0.000000e+00 : f32
      %14 = vector.broadcast %cst_12 : f32 to vector<16x128xf32>
      %c0_13 = arith.constant 0 : index
      %c0_14 = arith.constant 0 : index
      %15 = vector.load %arg7[%c0_13, %c0_14] : memref<16x128xf32, #tpu.memory_space<vmem>>, vector<16x128xf32>
      tpu.vector_store %arg7[%c0_13, %c0_14], %14 {strides = array<i32>} : memref<16x128xf32, #tpu.memory_space<vmem>>, vector<16x128xf32>,
    } else {
    }
    %c0 = arith.constant 0 : index
    %c0_1 = arith.constant 0 : index
    %3 = vector.load %arg7[%c0, %c0_1] : memref<16x128xf32, #tpu.memory_space<vmem>>, vector<16x128xf32>
    %c0_2 = arith.constant 0 : index
    %c0_3 = arith.constant 0 : index
    %c0_4 = arith.constant 0 : index
    %4 = vector.load %arg3[%c0_2, %c0_3, %c0_4] : memref<1x16x128xf32, #tpu.memory_space<vmem>>, vector<1x16x128xf32>
    %5 = vector.shape_cast %4 : vector<1x16x128xf32> to vector<16x128xf32>
    %c0_5 = arith.constant 0 : index
    %c0_6 = arith.constant 0 : index
    %c0_7 = arith.constant 0 : index
    %6 = vector.load %arg4[%c0_5, %c0_6, %c0_7] : memref<1x128x128xf32, #tpu.memory_space<vmem>>, vector<1x128x128xf32>
    %7 = vector.shape_cast %6 : vector<1x128x128xf32> to vector<128x128xf32>
    %cst = arith.constant dense<0.000000e+00> : vector<16x128xf32>
    %8 = tpu.matmul %5, %7, %cst {dimension_numbers = #tpu.dot_dimension_numbers<[1], [0], [0], [1], [0, 0, 1, 1], [], []>} : vector<16x128xf32>, vector<128x128xf32>, vector<16x128xf32> -> vector<16x128xf32>
    %9 = arith.addf %3, %8 : vector<16x128xf32>
    %c0_8 = arith.constant 0 : index
    %c0_9 = arith.constant 0 : index
    %10 = vector.load %arg7[%c0_8, %c0_9] : memref<16x128xf32, #tpu.memory_space<vmem>>, vector<16x128xf32>
    tpu.vector_store %arg7[%c0_8, %c0_9], %9 {strides = array<i32>} : memref<16x128xf32, #tpu.memory_space<vmem>>, vector<16x128xf32>,
    %c0_i32_10 = arith.constant 0 : i32
    %11 = arith.cmpi eq, %arg2, %c0_i32_10 : i32
    %12 = arith.extui %11 : i1 to i32
    %c0_i32_11 = arith.constant 0 : i32
    %13 = arith.cmpi ne, %12, %c0_i32_11 : i32
    scf.if %13 {
      %c0_12 = arith.constant 0 : index
      %c0_13 = arith.constant 0 : index
      %14 = vector.load %arg7[%c0_12, %c0_13] : memref<16x128xf32, #tpu.memory_space<vmem>>, vector<16x128xf32>
      %c0_14 = arith.constant 0 : index
      %c0_15 = arith.constant 0 : index
      %c0_16 = arith.constant 0 : index
      %15 = vector.load %arg5[%c0_14, %c0_15, %c0_16] : memref<1x16x1xf32, #tpu.memory_space<vmem>>, vector<1x16x1xf32>
      %16 = vector.shape_cast %15 : vector<1x16x1xf32> to vector<16x1xf32>
      %17 = vector.broadcast %16 : vector<16x1xf32> to vector<16x128xf32>
      %18 = arith.mulf %14, %17 : vector<16x128xf32>
      %c0_17 = arith.constant 0 : index
      %c0_18 = arith.constant 0 : index
      %c0_19 = arith.constant 0 : index
      %19 = vector.load %arg6[%c0_17, %c0_18, %c0_19] : memref<1x16x128xf32, #tpu.memory_space<vmem>>, vector<1x16x128xf32>
      %20 = vector.shape_cast %19 : vector<1x16x128xf32> to vector<16x128xf32>
      %21 = vector.shape_cast %18 : vector<16x128xf32> to vector<1x16x128xf32>
      tpu.vector_store %arg6[%c0_17, %c0_18, %c0_19], %21 {strides = array<i32>} : memref<1x16x128xf32, #tpu.memory_space<vmem>>, vector<1x16x128xf32>,
    } else {
    }
    return
  }
  func.func @transform_0(%arg0: i32, %arg1: i32, %arg2: i32) -> (i32, i32, i32) {
    %c0_i32 = arith.constant 0 : i32
    %c0_i32_0 = arith.constant 0 : i32
    return %arg0, %c0_i32, %arg2 : i32, i32, i32
  }
  func.func @transform_1(%arg0: i32, %arg1: i32, %arg2: i32) -> (i32, i32, i32) {
    %c0_i32 = arith.constant 0 : i32
    return %arg0, %arg2, %arg1 : i32, i32, i32
  }
  func.func @transform_2(%arg0: i32, %arg1: i32, %arg2: i32) -> (i32, i32, i32) {
    %c0_i32 = arith.constant 0 : i32
    %c0_i32_0 = arith.constant 0 : i32
    %c0_i32_1 = arith.constant 0 : i32
    return %arg0, %c0_i32, %c0_i32_0 : i32, i32, i32
  }
  func.func @transform_3(%arg0: i32, %arg1: i32, %arg2: i32) -> (i32, i32, i32) {
    %c0_i32 = arith.constant 0 : i32
    %c0_i32_0 = arith.constant 0 : i32
    return %arg0, %c0_i32, %arg1 : i32, i32, i32
  }
}

</mosaic_0001>

<llo_original>
// kernel: tile.13
$region0: #{tile.13}
  #allocation0 [shape = 's32[1]{0}', space=sflag, size = 0x4, scoped, tag = 'scoped memory for tile.13']
  %s0 = inlined_call_operand.vmem [shape: f32[8], index: 0, kind: input, shape index: {}]
  %s1 = inlined_call_operand.vmem [shape: f32[2,8], index: 1, kind: output, shape index: {}]
  // Predicated region
  $region2: #{tile.13} parent=0 // pred_check
    _
  $region3: #{tile.13} parent=0 // pred_check_branch
    %3 = sbr.rel (0) target = $region5
  $region4: #{tile.13} parent=0 // pred_region
    _
  $region5: #{tile.13} parent=0 // pred_fallthru
    _
  %v4 = vld [vmem:[%s0] ss:$0 sm:$0xff]
  %5 = vst [vmem:[%s1] sm:$0x3] %v4

// kernel: _lambda_.1
$region0: #{_lambda_.1}
  #allocation0 [shape = 'u32[]', space=smem, size = 0x4, offset = 0x4, fixed_abs, tag = 'smem constant byte address 0x4 - core index']
  #allocation1 [shape = 'u32[144,128]{1,0:T(1,128)}', space=vmem, size = 0x12000, scoped, tag = 'internal scratch']
  #allocation2 [shape = 'f32[16,128]{1,0:T(8,128)}', space=vmem, size = 0x2000, scoped, tag = 'scratch operand']
  %s0 = inlined_call_operand.vmem [shape: f32[2,16,128], index: 0, kind: input, shape index: {}]
  %s1 = inlined_call_operand.vmem [shape: f32[2,128,128], index: 1, kind: input, shape index: {}]
  %s2 = inlined_call_operand.vmem [shape: f32[2,16,1], index: 2, kind: input, shape index: {}]
  %s3 = inlined_call_operand.vmem [shape: f32[2,16,128], index: 3, kind: output, shape index: {}]
  %s4 = sld [smem:[#allocation0]]
  $region53: #{_lambda_.1} parent=0
    _
  %s6 = ssub.s32 1, %s4
  %s7 = scalar_select 0, %s6, %s4
  loop: start=0, step=1, limit=4
  $region2: #{_lambda_.1} parent=0 // loop_pre_header
    _
  $region3: #{_lambda_.1} parent=0 // loop_header
    %s9 = sphi 0, %s13
    %p10 = scmp.ge.s32.totalorder %s9, 4
    %s16 = sphi 0, %s35
    %s17 = sphi 0, %s31
    %s18 = sphi 0, %s27
    %s19 = sphi 0, %s16
    %s20 = sphi 0, %s17
    %s21 = sphi 0, %s18
    %s22 = sphi 0, %s19
    %s23 = sphi 0, %s20
    %s24 = sphi 0, %s21
    %s40 = sphi 0, %s42
    %s43 = sphi 0, %s40
    %s44 = sphi 0, %s43
    %s60 = sphi 0, %s44
    %s70 = sphi 0, %s72
    %s73 = sphi 0, %s70
    %s74 = sphi 0, %s73
    %s90 = sphi 0, %s74
    %s96 = sphi 0, %s98
    %s99 = sphi 0, %s96
    %s100 = sphi 0, %s99
    %s116 = sphi 0, %s100
    %s124 = sphi 0, %s126
    %s127 = sphi 0, %s124
    %s128 = sphi 0, %s127
    %s144 = sphi 0, %s128
  $region4: #{_lambda_.1} parent=0 // loop_header_branch
    %12 = sbr.rel (%p10) target = $region8
  $region5: #{_lambda_.1} parent=0 // loop_body
    %s14 = ssub.s32 %s9, 1
    %s15 = ssub.s32 %s9, 2
    %s25 = sadd.s32 1, %s18
    %p26 = scmp.ge.s32.totalorder %s25, 1
    %s27 = scalar_select %p26, 0, %s25
    %s28 = sadd.s32 1, %s17
    %s29 = scalar_select %p26, %s28, %s17
    %p30 = scmp.ge.s32.totalorder %s29, 1
    %s31 = scalar_select %p30, 0, %s29
    %s32 = sadd.s32 1, %s16
    %s33 = scalar_select %p30, %s32, %s16
    %p34 = scmp.ge.s32.totalorder %s33, 2
    %s35 = scalar_select %p34, 0, %s33
    %s36 = ssub.s32 %s16, %s35
    %s37 = ssub.s32 %s18, %s27
    %s38 = sor.u32 %s36, %s37
    %p39 = scmp.eq.s32.totalorder %s38, 0
    %s41 = sadd.s32 %s40, 1
    %s42 = scalar_select %p39, %s40, %s41
    %p45 = pneg %p39
    %p46 = scmp.eq.s32.totalorder %s9, 1
    %p47 = por %p45, %p46
    %p48 = scmp.ne.s32.totalorder %s40, %s43
    %p49 = scmp.eq.s32.totalorder %s9, 0
    %p50 = por %p48, %p49
    %p51 = scmp.ne.s32.totalorder %s40, %s43
    %p52 = scmp.eq.s32.totalorder %s14, 1
    %p53 = por %p51, %p52
    %p54 = scmp.ne.s32.totalorder %s43, %s44
    %p55 = scmp.eq.s32.totalorder %s14, 0
    %p56 = por %p54, %p55
    %p57 = scmp.ne.s32.totalorder %s43, %s44
    %p58 = scmp.eq.s32.totalorder %s15, 1
    %p59 = por %p57, %p58
    %p61 = scmp.ne.s32.totalorder %s44, %s60
    %p62 = scmp.eq.s32.totalorder %s15, 0
    %p63 = por %p61, %p62
    %s64 = ssub.s32 %s16, %s35
    %s65 = ssub.s32 %s18, %s27
    %s66 = sor.u32 %s64, %s65
    %s67 = ssub.s32 %s17, %s31
    %s68 = sor.u32 %s66, %s67
    %p69 = scmp.eq.s32.totalorder %s68, 0
    %s71 = sadd.s32 %s70, 1
    %s72 = scalar_select %p69, %s70, %s71
    %p75 = pneg %p69
    %p76 = scmp.eq.s32.totalorder %s9, 1
    %p77 = por %p75, %p76
    %p78 = scmp.ne.s32.totalorder %s70, %s73
    %p79 = scmp.eq.s32.totalorder %s9, 0
    %p80 = por %p78, %p79
    %p81 = scmp.ne.s32.totalorder %s70, %s73
    %p82 = scmp.eq.s32.totalorder %s14, 1
    %p83 = por %p81, %p82
    %p84 = scmp.ne.s32.totalorder %s73, %s74
    %p85 = scmp.eq.s32.totalorder %s14, 0
    %p86 = por %p84, %p85
    %p87 = scmp.ne.s32.totalorder %s73, %s74
    %p88 = scmp.eq.s32.totalorder %s15, 1
    %p89 = por %p87, %p88
    %p91 = scmp.ne.s32.totalorder %s74, %s90
    %p92 = scmp.eq.s32.totalorder %s15, 0
    %p93 = por %p91, %p92
    %s94 = ssub.s32 %s16, %s35
    %p95 = scmp.eq.s32.totalorder %s94, 0
    %s97 = sadd.s32 %s96, 1
    %s98 = scalar_select %p95, %s96, %s97
    %p101 = pneg %p95
    %p102 = scmp.eq.s32.totalorder %s9, 1
    %p103 = por %p101, %p102
    %p104 = scmp.ne.s32.totalorder %s96, %s99
    %p105 = scmp.eq.s32.totalorder %s9, 0
    %p106 = por %p104, %p105
    %p107 = scmp.ne.s32.totalorder %s96, %s99
    %p108 = scmp.eq.s32.totalorder %s14, 1
    %p109 = por %p107, %p108
    %p110 = scmp.ne.s32.totalorder %s99, %s100
    %p111 = scmp.eq.s32.totalorder %s14, 0
    %p112 = por %p110, %p111
    %p113 = scmp.ne.s32.totalorder %s99, %s100
    %p114 = scmp.eq.s32.totalorder %s15, 1
    %p115 = por %p113, %p114
    %p117 = scmp.ne.s32.totalorder %s100, %s116
    %p118 = scmp.eq.s32.totalorder %s15, 0
    %p119 = por %p117, %p118
    %s120 = ssub.s32 %s16, %s35
    %s121 = ssub.s32 %s17, %s31
    %s122 = sor.u32 %s120, %s121
    %p123 = scmp.eq.s32.totalorder %s122, 0
    %s125 = sadd.s32 %s124, 1
    %s126 = scalar_select %p123, %s124, %s125
    %p129 = pneg %p123
    %p130 = scmp.eq.s32.totalorder %s9, 1
    %p131 = por %p129, %p130
    %p132 = scmp.ne.s32.totalorder %s124, %s127
    %p133 = scmp.eq.s32.totalorder %s9, 0
    %p134 = por %p132, %p133
    %p135 = scmp.ne.s32.totalorder %s124, %s127
    %p136 = scmp.eq.s32.totalorder %s14, 1
    %p137 = por %p135, %p136
    %p138 = scmp.ne.s32.totalorder %s127, %s128
    %p139 = scmp.eq.s32.totalorder %s14, 0
    %p140 = por %p138, %p139
    %p141 = scmp.ne.s32.totalorder %s127, %s128
    %p142 = scmp.eq.s32.totalorder %s15, 1
    %p143 = por %p141, %p142
    %p145 = scmp.ne.s32.totalorder %s128, %s144
    %p146 = scmp.eq.s32.totalorder %s15, 0
    %p147 = por %p145, %p146
    %p148 = scmp.le.s32.totalorder 1, %s9
    %p149 = scmp.lt.s32.totalorder %s9, 3
    %p150 = pnand %p148, %p149
    %p151 = pneg %p150
    // Predicated region
    $region9: #{_lambda_.1} parent=5 // pred_check
      _
    $region10: #{_lambda_.1} parent=5 // pred_check_branch
      %153 = sbr.rel (%p150) target = $region12
    $region11: #{_lambda_.1} parent=5 // pred_region
      %s154 = ssub.s32 %s9, 1
    $region12: #{_lambda_.1} parent=5 // pred_fallthru
      _
    %p155 = scmp.lt.s32.totalorder %s9, 2
    // Predicated region
    $region13: #{_lambda_.1} parent=5 // pred_check
      %p156 = pneg %p155
    $region14: #{_lambda_.1} parent=5 // pred_check_branch
      %158 = sbr.rel (%p156) target = $region16
    $region15: #{_lambda_.1} parent=5 // pred_region
      // Predicated region
      $region17: #{_lambda_.1} parent=15 // pred_check
        %p159 = pneg %p50
      $region18: #{_lambda_.1} parent=15 // pred_check_branch
        %161 = sbr.rel (%p159) target = $region20
      $region19: #{_lambda_.1} parent=15 // pred_region
        %p162 = scmp.lt.s32.totalorder %s16, 1
        %s163 = scalar_select %p162, %s16, 1
        %p164 = scmp.lt.s32.totalorder %s18, 0
        %s165 = scalar_select %p164, %s18, 0
        %s166 = smul.addr %s163, 2
        %s167 = sadd.s32 %s165, %s166
        %s168 = smul.addr %s167, 8
        %s169 = scalar_lea.vmem %s0, %s168
      $region20: #{_lambda_.1} parent=15 // pred_fallthru
        _
      // Predicated region
      $region21: #{_lambda_.1} parent=15 // pred_check
        %p170 = pneg %p80
      $region22: #{_lambda_.1} parent=15 // pred_check_branch
        %172 = sbr.rel (%p170) target = $region24
      $region23: #{_lambda_.1} parent=15 // pred_region
        %s173 = smul.u32 16, %s18
        %p174 = scmp.lt.s32.totalorder %s16, 1
        %s175 = scalar_select %p174, %s16, 1
        %p176 = scmp.lt.s32.totalorder %s173, 15
        %s177 = scalar_select %p176, %s173, 15
        %p178 = scmp.lt.s32.totalorder %s17, 0
        %s179 = scalar_select %p178, %s17, 0
        %s180 = sadd.s32 %s179, %s177
        %s181 = smul.addr %s175, 16
        %s182 = sadd.s32 %s180, %s181
        %s183 = smul.addr %s182, 8
        %s184 = scalar_lea.vmem %s1, %s183
        %s185 = smul.u32 16, %s18
      $region24: #{_lambda_.1} parent=15 // pred_fallthru
        _
      // Predicated region
      $region25: #{_lambda_.1} parent=15 // pred_check
        %p186 = pneg %p106
      $region26: #{_lambda_.1} parent=15 // pred_check_branch
        %188 = sbr.rel (%p186) target = $region28
      $region27: #{_lambda_.1} parent=15 // pred_region
        %p189 = scmp.lt.s32.totalorder %s16, 1
        %s190 = scalar_select %p189, %s16, 1
        %s191 = smul.addr %s190, 2
        %s192 = smul.addr %s191, 8
        %s193 = scalar_lea.vmem %s2, %s192
      $region28: #{_lambda_.1} parent=15 // pred_fallthru
        _
    $region16: #{_lambda_.1} parent=5 // pred_fallthru
      _
    %p194 = scmp.le.s32.totalorder 1, %s9
    %p195 = scmp.lt.s32.totalorder %s9, 3
    %p196 = pnand %p194, %p195
    %p197 = pneg %p196
    // Predicated region
    $region29: #{_lambda_.1} parent=5 // pred_check
      _
    $region30: #{_lambda_.1} parent=5 // pred_check_branch
      %199 = sbr.rel (%p196) target = $region32
    $region31: #{_lambda_.1} parent=5 // pred_region
      %s200 = ssub.s32 %s9, 1
      %p201 = scmp.lt.s32.totalorder %s19, 1
      %s202 = scalar_select %p201, %s19, 1
      %p203 = scmp.lt.s32.totalorder %s21, 0
      %s204 = scalar_select %p203, %s21, 0
      %s205 = smul.addr %s202, 2
      %s206 = sadd.s32 %s204, %s205
      %s207 = smul.addr %s206, 8
      %s208 = scalar_lea.vmem %s0, %s207
      %p209 = pneg %p56
      %p210 = pneg %p53
      %s211 = smul.u32 16, %s21
      %p212 = scmp.lt.s32.totalorder %s19, 1
      %s213 = scalar_select %p212, %s19, 1
      %p214 = scmp.lt.s32.totalorder %s211, 15
      %s215 = scalar_select %p214, %s211, 15
      %p216 = scmp.lt.s32.totalorder %s20, 0
      %s217 = scalar_select %p216, %s20, 0
      %s218 = sadd.s32 %s217, %s215
      %s219 = smul.addr %s213, 16
      %s220 = sadd.s32 %s218, %s219
      %s221 = smul.addr %s220, 8
      %s222 = scalar_lea.vmem %s1, %s221
      %p223 = pneg %p86
      %p224 = pneg %p83
      %p225 = scmp.lt.s32.totalorder %s19, 1
      %s226 = scalar_select %p225, %s19, 1
      %s227 = smul.addr %s226, 2
      %s228 = smul.addr %s227, 8
      %s229 = scalar_lea.vmem %s2, %s228
      %p230 = pneg %p112
      %p231 = pneg %p109
      %p232 = pneg %p140
      %p233 = pneg %p137
      %p234 = scmp.lt.s32.totalorder %s19, 1
      %s235 = scalar_select %p234, %s19, 1
      %p236 = scmp.lt.s32.totalorder %s20, 0
      %s237 = scalar_select %p236, %s20, 0
      %s238 = smul.addr %s235, 2
      %s239 = sadd.s32 %s237, %s238
      %s240 = smul.addr %s239, 8
      %s241 = scalar_lea.vmem %s3, %s240
      %p242 = scmp.lt.s32.totalorder %s19, 1
      %s243 = scalar_select %p242, %s19, 1
      %p244 = scmp.lt.s32.totalorder %s21, 0
      %s245 = scalar_select %p244, %s21, 0
      %s246 = smul.addr %s243, 2
      %s247 = sadd.s32 %s245, %s246
      %s248 = smul.addr %s247, 8
      %s249 = scalar_lea.vmem %s0, %s248
      %s250 = smul.u32 16, %s21
      %p251 = scmp.lt.s32.totalorder %s19, 1
      %s252 = scalar_select %p251, %s19, 1
      %p253 = scmp.lt.s32.totalorder %s250, 15
      %s254 = scalar_select %p253, %s250, 15
      %p255 = scmp.lt.s32.totalorder %s20, 0
      %s256 = scalar_select %p255, %s20, 0
      %s257 = sadd.s32 %s256, %s254
      %s258 = smul.addr %s252, 16
      %s259 = sadd.s32 %s257, %s258
      %s260 = smul.addr %s259, 8
      %s261 = scalar_lea.vmem %s1, %s260
      %s262 = smul.u32 16, %s21
      %p263 = scmp.lt.s32.totalorder %s19, 1
      %s264 = scalar_select %p263, %s19, 1
      %s265 = smul.addr %s264, 2
      %s266 = smul.addr %s265, 8
      %s267 = scalar_lea.vmem %s2, %s266
      %p268 = scmp.lt.s32.totalorder %s19, 1
      %s269 = scalar_select %p268, %s19, 1
      %p270 = scmp.lt.s32.totalorder %s20, 0
      %s271 = scalar_select %p270, %s20, 0
      %s272 = smul.addr %s269, 2
      %s273 = sadd.s32 %s271, %s272
      %s274 = smul.addr %s273, 8
      %s275 = scalar_lea.vmem %s3, %s274
      %p276 = scmp.eq.s32.totalorder %s21, 0
      // Predicated region
      $region33: #{_lambda_.1} parent=31 // pred_check
        %p277 = pneg %p276
      $region34: #{_lambda_.1} parent=31 // pred_check_branch
        %279 = sbr.rel (%p277) target = $region36
      $region35: #{_lambda_.1} parent=31 // pred_region
        %280 = vst [vmem:[#allocation2] sm:$0xff] 0.0
        %281 = vst [vmem:[#allocation2 + $0x8] sm:$0xff] 0.0
      $region36: #{_lambda_.1} parent=31 // pred_fallthru
        _
      %v282 = vld [vmem:[#allocation2] sm:$0xff]
      %v283 = vld [vmem:[#allocation2 + $0x8] sm:$0xff]
      %v284 = vld [vmem:[%s249] sm:$0xff]
      %v285 = vld [vmem:[%s249 + $0x8] sm:$0xff]
      %v286 = vld [vmem:[%s261] sm:$0xff]
      %v287 = vld [vmem:[%s261 + $0x8] sm:$0xff]
      %v288 = vld [vmem:[%s261 + $0x10] sm:$0xff]
      %v289 = vld [vmem:[%s261 + $0x18] sm:$0xff]
      %v290 = vld [vmem:[%s261 + $0x20] sm:$0xff]
      %v291 = vld [vmem:[%s261 + $0x28] sm:$0xff]
      %v292 = vld [vmem:[%s261 + $0x30] sm:$0xff]
      %v293 = vld [vmem:[%s261 + $0x38] sm:$0xff]
      %v294 = vld [vmem:[%s261 + $0x40] sm:$0xff]
      %v295 = vld [vmem:[%s261 + $0x48] sm:$0xff]
      %v296 = vld [vmem:[%s261 + $0x50] sm:$0xff]
      %v297 = vld [vmem:[%s261 + $0x58] sm:$0xff]
      %v298 = vld [vmem:[%s261 + $0x60] sm:$0xff]
      %v299 = vld [vmem:[%s261 + $0x68] sm:$0xff]
      %v300 = vld [vmem:[%s261 + $0x70] sm:$0xff]
      %v301 = vld [vmem:[%s261 + $0x78] sm:$0xff]
      %302 = vmatprep.subr.mxu0 0.0
      %303 = vmatpush1.msra.mxu0 %v286
      %304 = vmatprep.subr.mxu0 0.0
      %305 = vmatpush1.msra.mxu0 %v287
      %306 = vmatprep.subr.mxu0 0.0
      %307 = vmatpush1.msra.mxu0 %v288
      %308 = vmatprep.subr.mxu0 0.0
      %309 = vmatpush1.msra.mxu0 %v289
      %310 = vmatprep.subr.mxu0 0.0
      %311 = vmatpush1.msra.mxu0 %v290
      %312 = vmatprep.subr.mxu0 0.0
      %313 = vmatpush1.msra.mxu0 %v291
      %314 = vmatprep.subr.mxu0 0.0
      %315 = vmatpush1.msra.mxu0 %v292
      %316 = vmatprep.subr.mxu0 0.0
      %317 = vmatpush1.msra.mxu0 %v293
      %318 = vmatprep.subr.mxu0 0.0
      %319 = vmatpush1.msra.mxu0 %v294
      %320 = vmatprep.subr.mxu0 0.0
      %321 = vmatpush1.msra.mxu0 %v295
      %322 = vmatprep.subr.mxu0 0.0
      %323 = vmatpush1.msra.mxu0 %v296
      %324 = vmatprep.subr.mxu0 0.0
      %325 = vmatpush1.msra.mxu0 %v297
      %326 = vmatprep.subr.mxu0 0.0
      %327 = vmatpush1.msra.mxu0 %v298
      %328 = vmatprep.subr.mxu0 0.0
      %329 = vmatpush1.msra.mxu0 %v299
      %330 = vmatprep.subr.mxu0 0.0
      %331 = vmatpush1.msra.mxu0 %v300
      %332 = vmatprep.subr.mxu0 0.0
      %333 = vmatpush1.msra.mxu0 %v301
      %334 = vmatprep.subr.mxu0 0.0
      %335 = vmatpush1.msra.mxu0 0.0
      %336 = vmatprep.subr.mxu0 0.0
      %337 = vmatpush1.msra.mxu0 0.0
      %338 = vmatprep.subr.mxu0 0.0
      %339 = vmatpush1.msra.mxu0 0.0
      %340 = vmatprep.subr.mxu0 0.0
      %341 = vmatpush1.msra.mxu0 0.0
      %342 = vmatprep.subr.mxu0 0.0
      %343 = vmatpush1.msra.mxu0 0.0
      %344 = vmatprep.subr.mxu0 0.0
      %345 = vmatpush1.msra.mxu0 0.0
      %346 = vmatprep.subr.mxu0 0.0
      %347 = vmatpush1.msra.mxu0 0.0
      %348 = vmatprep.subr.mxu0 0.0
      %349 = vmatpush1.msra.mxu0 0.0
      %350 = vmatprep.subr.mxu0 0.0
      %351 = vmatpush1.msra.mxu0 0.0
      %352 = vmatprep.subr.mxu0 0.0
      %353 = vmatpush1.msra.mxu0 0.0
      %354 = vmatprep.subr.mxu0 0.0
      %355 = vmatpush1.msra.mxu0 0.0
      %356 = vmatprep.subr.mxu0 0.0
      %357 = vmatpush1.msra.mxu0 0.0
      %358 = vmatprep.subr.mxu0 0.0
      %359 = vmatpush1.msra.mxu0 0.0
      %360 = vmatprep.subr.mxu0 0.0
      %361 = vmatpush1.msra.mxu0 0.0
      %362 = vmatprep.subr.mxu0 0.0
      %363 = vmatpush1.msra.mxu0 0.0
      %364 = vmatprep.subr.mxu0 0.0
      %365 = vmatpush1.msra.mxu0 0.0
      %366 = vmatprep.mubr.f32.mxu0 0.0
      %367 = vmatmul.mubr.f32.gmra.mrb[0].mxu0 %v284
      %v368 = vpop.f32.mrb[0].mxu0
      %v369 = vadd.f32 0.0, %v368
      %v370 = vpop.f32.mrb[0].mxu0
      %371 = vmatprep.mubr.f32.mxu0 0.0
      %372 = vmatmul.mubr.f32.gmra.mrb[0].mxu0 %v285
      %v373 = vpop.f32.mrb[0].mxu0
      %v374 = vadd.f32 0.0, %v373
      %v375 = vpop.f32.mrb[0].mxu0
      %376 = vdwg.mxu0
      %v377 = vadd.f32 %v282, %v369
      %v378 = vadd.f32 %v283, %v374
      %379 = vst [vmem:[#allocation2] sm:$0xff] %v377
      %380 = vst [vmem:[#allocation2 + $0x8] sm:$0xff] %v378
      // Predicated region
      $region37: #{_lambda_.1} parent=31 // pred_check
        %p381 = pneg %p276
      $region38: #{_lambda_.1} parent=31 // pred_check_branch
        %383 = sbr.rel (%p381) target = $region40
      $region39: #{_lambda_.1} parent=31 // pred_region
        %v384 = vld [vmem:[#allocation2] sm:$0xff]
        %v385 = vld [vmem:[#allocation2 + $0x8] sm:$0xff]
        %v386 = vld [vmem:[%s267] sm:$0xff]
        %v387 = vld [vmem:[%s267 + $0x8] sm:$0xff]
        %389 = vset.pattern.permute.xlu0 0
        %390 = vperm.xlu0 %389, %v386
        %v391 = vpop.permute.xlu0 %390
        %394 = vset.pattern.permute.xlu0 0
        %395 = vperm.xlu0 %394, %v387
        %v396 = vpop.permute.xlu0 %395
        %v398 = vmul.f32 %v384, %v391
        %v399 = vmul.f32 %v385, %v396
        %400 = vst [vmem:[%s275] sm:$0xff] %v398
        %401 = vst [vmem:[%s275 + $0x8] sm:$0xff] %v399
      $region40: #{_lambda_.1} parent=31 // pred_fallthru
        _
      %p402 = scmp.lt.s32.totalorder %s19, 1
      %s403 = scalar_select %p402, %s19, 1
      %p404 = scmp.lt.s32.totalorder %s20, 0
      %s405 = scalar_select %p404, %s20, 0
      %s406 = smul.addr %s403, 2
      %s407 = sadd.s32 %s405, %s406
      %s408 = smul.addr %s407, 8
      %s409 = scalar_lea.vmem %s3, %s408
      // Predicated region
      $region41: #{_lambda_.1} parent=31 // pred_check
        %p410 = pneg %p137
      $region42: #{_lambda_.1} parent=31 // pred_check_branch
        %412 = sbr.rel (%p410) target = $region44
      $region43: #{_lambda_.1} parent=31 // pred_region
        _
      $region44: #{_lambda_.1} parent=31 // pred_fallthru
        _
    $region32: #{_lambda_.1} parent=5 // pred_fallthru
      _
    %p413 = scmp.le.s32.totalorder 2, %s9
    // Predicated region
    $region45: #{_lambda_.1} parent=5 // pred_check
      %p414 = pneg %p413
    $region46: #{_lambda_.1} parent=5 // pred_check_branch
      %416 = sbr.rel (%p414) target = $region48
    $region47: #{_lambda_.1} parent=5 // pred_region
      %s417 = ssub.s32 %s9, 2
      // Predicated region
      $region49: #{_lambda_.1} parent=47 // pred_check
        %p418 = pneg %p143
      $region50: #{_lambda_.1} parent=47 // pred_check_branch
        %420 = sbr.rel (%p418) target = $region52
      $region51: #{_lambda_.1} parent=47 // pred_region
        %p421 = scmp.lt.s32.totalorder %s22, 1
        %s422 = scalar_select %p421, %s22, 1
        %p423 = scmp.lt.s32.totalorder %s23, 0
        %s424 = scalar_select %p423, %s23, 0
        %s425 = smul.addr %s422, 2
        %s426 = sadd.s32 %s424, %s425
        %s427 = smul.addr %s426, 8
        %s428 = scalar_lea.vmem %s3, %s427
      $region52: #{_lambda_.1} parent=47 // pred_fallthru
        _
    $region48: #{_lambda_.1} parent=5 // pred_fallthru
      _
  $region6: #{_lambda_.1} parent=0 // loop_footer
    %s13 = sadd.s32 1, %s9
  $region7: #{_lambda_.1} parent=0 // loop_footer_branch
    %8 = sbr.rel target = $region3
  $region8: #{_lambda_.1} parent=0 // loop_exit
    _

</llo_original>
